<compile_context>
chip_gen: v7x
topology: tpu7x:2x2x1
jax: 0.10.0
libtpu: 0.0.40
codegen_flags: <defaults>
</compile_context>

<pallas_src>
import math
import functools

import numpy as np
import jax
import jax.numpy as jnp
from jax.experimental import pallas as pl
from jax.experimental.pallas import tpu as pltpu


# Standard JPEG chrominance quantization table (same values as jpeg.py's c_table;
# the 4x4 sub-block is symmetric, so the .T in the original source is a no-op).
_C_TABLE = np.full((8, 8), 99, dtype=np.float32)
_C_TABLE[:4, :4] = np.array(
    [[17, 18, 24, 47],
     [18, 21, 26, 66],
     [24, 26, 56, 99],
     [47, 66, 99, 99]], dtype=np.float32).T


def _round_up(x, m):
    return ((x + m - 1) // m) * m


def _c_quantize_kernel(x_ref, inv_ref, o_ref, *, rounding):
    # x_ref  : (TR, LANE) tile of flattened DCT blocks, native input dtype
    # inv_ref: (1, LANE)  1 / (c_table * factor), tiled along the lane axis
    # o_ref  : (TR, LANE) float32
    x = x_ref[...].astype(jnp.float32)          # cast in-kernel (native-dtype streaming)
    o_ref[...] = rounding(x * inv_ref[...]).astype(o_ref.dtype)


def c_quantize(image, factor=1.0, rounding=jnp.round):
    """image: (..., 8, 8) -> rounding(image.float() / (c_table * factor)), f32."""
    orig_shape = image.shape
    assert orig_shape[-2:] == (8, 8), "c_quantize expects trailing (8, 8) DCT blocks"
    nblocks = math.prod(orig_shape[:-2])          # == 1 for a bare (8, 8) input

    # ---- lane-dense layout ---------------------------------------------------
    # Pack `bpr` 8x8 blocks per row: lane = 64*bpr.  bpr must be even so the lane
    # axis is a multiple of 128 (unmasked stores); pick the largest even divisor
    # of nblocks up to 16 (lane up to 1024).  Odd nblocks -> 64-lane fallback
    # (single pass beats re-streaming a prefix/pad).
    bpr = 1
    for cand in range(min(16, nblocks), 1, -1):
        if cand % 2 == 0 and nblocks % cand == 0:
            bpr = cand
            break
    lane = bpr * 64
    rows = nblocks // bpr

    # Free trailing-dim reshape of contiguous data; NO dtype cast here.
    x2 = image.reshape(rows, lane)

    # ---- reciprocal divisor (wrapper-side; multiply in kernel) ----------------
    if isinstance(factor, (int, float, np.floating, np.integer)):
        inv64 = (np.float32(1.0) / (_C_TABLE.reshape(64) * np.float32(factor))).astype(np.float32)
        inv2 = jnp.asarray(np.tile(inv64, bpr).reshape(1, lane), dtype=jnp.float32)
    else:  # traced factor (e.g. under jit/vmap): compute reciprocal at trace time
        inv64 = (1.0 / (jnp.asarray(_C_TABLE.reshape(64), dtype=jnp.float32) * factor)).astype(jnp.float32)
        inv2 = jnp.tile(inv64, bpr).reshape(1, lane)

    # ---- row tiling -----------------------------------------------------------
    # <= 2 MiB of f32 output per block => double-buffered in+out <= ~8 MiB,
    # inside the default scoped VMEM on v5e/v6e/v7x (no vmem_limit override).
    tr_cap = max(32, (((2 * 1024 * 1024) // (lane * 4)) // 32) * 32)
    if rows <= 32:
        tr = rows                                   # block == full dims (always legal)
    elif rows <= 2 * tr_cap:
        # at least 2 grid steps so both v7x TensorCores get work
        tr = min(tr_cap, _round_up(pl.cdiv(rows, 2), 32))
    else:
        tr = tr_cap
    grid = (pl.cdiv(rows, tr),)                     # ragged last tile: masked writes

    out2 = pl.pallas_call(
        functools.partial(_c_quantize_kernel, rounding=rounding),
        out_shape=jax.ShapeDtypeStruct((rows, lane), jnp.float32),
        grid_spec=pltpu.PrefetchScalarGridSpec(
            num_scalar_prefetch=0,
            grid=grid,
            in_specs=[
                pl.BlockSpec((tr, lane), lambda i: (i, 0)),   # activations (native dtype)
                pl.BlockSpec((1, lane), lambda i: (0, 0)),    # reciprocal table (resident)
            ],
            out_specs=pl.BlockSpec((tr, lane), lambda i: (i, 0)),
        ),
        compiler_params=pltpu.CompilerParams(
            # single data-parallel axis -> sharded across both TCs on v7x
            dimension_semantics=("parallel",),
        ),
    )(x2, inv2)

    return out2.reshape(orig_shape)


if __name__ == "__main__":
    key = jax.random.PRNGKey(0)

    # batch=2, 4 DCT blocks of 8x8 each (nblocks=8 -> 512-lane packing).
    B, N = 2, 4
    image = jax.random.normal(key, (B, N, 8, 8), dtype=jnp.float32) * 100.0
    factor = 2.0

    out = jax.block_until_ready(c_quantize(image, factor=factor))
    ref = jnp.round(image / (jnp.asarray(_C_TABLE) * factor))
    assert out.shape == image.shape and out.dtype == jnp.float32, (out.shape, out.dtype)
    assert jnp.allclose(out, ref, atol=1e-4), "f32 mismatch vs. reference"

    # bf16 input streamed natively (no wrapper-side f32 cast pass); odd nblocks
    # exercises the 64-lane fallback path.
    img_bf16 = (jax.random.normal(jax.random.PRNGKey(1), (3, 8, 8)) * 50.0).astype(jnp.bfloat16)
    out_bf16 = jax.block_until_ready(c_quantize(img_bf16, factor=1.0))
    ref_bf16 = jnp.round(img_bf16.astype(jnp.float32) / jnp.asarray(_C_TABLE))
    assert out_bf16.shape == img_bf16.shape and out_bf16.dtype == jnp.float32
    assert jnp.allclose(out_bf16, ref_bf16, atol=1e-4), "bf16 mismatch vs. reference"

    print("KERNEL_OK")
</pallas_src>

<mosaic_0001>
module attributes {stable_mosaic.version = 11 : i64} {
  func.func @_c_quantize_kernel(%arg0: i32, %arg1: memref<1x512xf32, #tpu.memory_space<vmem>>, %arg2: memref<1x512xf32, #tpu.memory_space<vmem>>, %arg3: memref<1x512xf32, #tpu.memory_space<vmem>>) attributes {dimension_semantics = [#tpu.dimension_semantics<parallel>], iteration_bounds = array<i64: 1>, scalar_prefetch = 0 : i64, scratch_operands = 0 : i64, tpu.core_type = #tpu.core_type<tc>, window_params = [{transform_indices = @transform_0, window_bounds = array<i64: 1, 512>}, {pipeline_mode = #tpu.pipeline_mode<synchronous>, transform_indices = @transform_1, window_bounds = array<i64: 1, 512>}, {transform_indices = @transform_2, window_bounds = array<i64: 1, 512>}]} {
    %c0 = arith.constant 0 : index
    %c0_0 = arith.constant 0 : index
    %0 = vector.load %arg1[%c0, %c0_0] : memref<1x512xf32, #tpu.memory_space<vmem>>, vector<1x512xf32>
    %c0_1 = arith.constant 0 : index
    %c0_2 = arith.constant 0 : index
    %1 = vector.load %arg2[%c0_1, %c0_2] : memref<1x512xf32, #tpu.memory_space<vmem>>, vector<1x512xf32>
    %2 = arith.mulf %0, %1 : vector<1x512xf32>
    %3 = math.roundeven %2 : vector<1x512xf32>
    %c0_3 = arith.constant 0 : index
    %c0_4 = arith.constant 0 : index
    %4 = vector.load %arg3[%c0_3, %c0_4] : memref<1x512xf32, #tpu.memory_space<vmem>>, vector<1x512xf32>
    tpu.vector_store %arg3[%c0_3, %c0_4], %3 {strides = array<i32>} : memref<1x512xf32, #tpu.memory_space<vmem>>, vector<1x512xf32>,
    return
  }
  func.func @transform_0(%arg0: i32) -> (i32, i32) {
    %c0_i32 = arith.constant 0 : i32
    %c0_i32_0 = arith.constant 0 : i32
    return %arg0, %c0_i32 : i32, i32
  }
  func.func @transform_1(%arg0: i32) -> (i32, i32) {
    %c0_i32 = arith.constant 0 : i32
    %c0_i32_0 = arith.constant 0 : i32
    %c0_i32_1 = arith.constant 0 : i32
    return %c0_i32, %c0_i32_0 : i32, i32
  }
  func.func @transform_2(%arg0: i32) -> (i32, i32) {
    %c0_i32 = arith.constant 0 : i32
    %c0_i32_0 = arith.constant 0 : i32
    return %arg0, %c0_i32 : i32, i32
  }
}

</mosaic_0001>

<llo_original>
// kernel: tpu_custom_call.1
$region0: #{tpu_custom_call.1}
  #allocation0 [shape = 'u32[]', space=smem, size = 0x4, offset = 0x4, fixed_abs, tag = 'smem constant byte address 0x4 - core index']
  #allocation1 [shape = 'u32[144,128]{1,0:T(1,128)}', space=vmem, size = 0x12000, scoped, tag = 'internal scratch']
  %s0 = inlined_call_operand.hbm [shape: f32[1,512], index: 0, kind: input, shape index: {}]
  %s1 = inlined_call_operand.hbm [shape: f32[1,512], index: 1, kind: input, shape index: {}]
  %s2 = inlined_call_operand.hbm [shape: f32[1,512], index: 2, kind: output, shape index: {}]
  %s3 = sld [smem:[#allocation0]]
  $region26: #{tpu_custom_call.1} parent=0
    _
  %s5 = ssub.s32 1, %s3
  %s6 = scalar_select 0, %s5, %s3
  $region1: #{tpu_custom_call.1} parent=0
    #allocation2 [shape = 'u8[2048]{0}', space=vmem, size = 0x800, scoped, tag = 'input window, operand 0, single buffered']
    #allocation3 [shape = 's32[1]{0}', space=sflag, size = 0x4, scoped, tag = 'scoped memory for tpu_custom_call.1']
    #allocation4 [shape = 's32[1]{0}', space=sflag, size = 0x4, scoped, tag = 'scoped memory for tpu_custom_call.1']
    #allocation5 [shape = 'u8[2048]{0}', space=vmem, size = 0x800, scoped, tag = 'input window, operand 1, single buffered']
    #allocation6 [shape = 's32[1]{0}', space=sflag, size = 0x4, scoped, tag = 'scoped memory for tpu_custom_call.1']
    #allocation7 [shape = 'u8[2048]{0}', space=vmem, size = 0x800, scoped, tag = 'output window, operand 0, single buffered']
    %7 = vsyncpa [#allocation3], 0
    %8 = vsyncpa [#allocation6], 0
    %9 = vsyncpa [#allocation4], 0
    // Predicated region
    $region2: #{tpu_custom_call.1} parent=1 // pred_check
      _
    $region3: #{tpu_custom_call.1} parent=1 // pred_check_branch
      %11 = sbr.rel (0) target = $region5
    $region4: #{tpu_custom_call.1} parent=1 // pred_region
      %s13 = ssub.s32 64, 64
      %14 = vsyncadd [#allocation3], %s13
      %s16 = sshll.u32 [#allocation2], 4
      %s17 = int_to_ptr.vmem [resolvable:$true] %s16
      %19 = dma.hbm_to_vmem [thread:$0]  %s0, 64, %s17, [#allocation3]
    $region5: #{tpu_custom_call.1} parent=1 // pred_fallthru
      _
    // Predicated region
    $region6: #{tpu_custom_call.1} parent=1 // pred_check
      _
    $region7: #{tpu_custom_call.1} parent=1 // pred_check_branch
      %21 = sbr.rel (0) target = $region9
    $region8: #{tpu_custom_call.1} parent=1 // pred_region
      %s23 = ssub.s32 64, 64
      %24 = vsyncadd [#allocation6], %s23
      %s26 = sshll.u32 [#allocation5], 4
      %s27 = int_to_ptr.vmem [resolvable:$true] %s26
      %29 = dma.hbm_to_vmem [thread:$0]  %s1, 64, %s27, [#allocation6]
    $region9: #{tpu_custom_call.1} parent=1 // pred_fallthru
      _
    // Predicated region
    $region10: #{tpu_custom_call.1} parent=1 // pred_check
      _
    $region11: #{tpu_custom_call.1} parent=1 // pred_check_branch
      %31 = sbr.rel (0) target = $region13
    $region12: #{tpu_custom_call.1} parent=1 // pred_region
      %32 = dma.done [#allocation3], 64
    $region13: #{tpu_custom_call.1} parent=1 // pred_fallthru
      _
    // Predicated region
    $region14: #{tpu_custom_call.1} parent=1 // pred_check
      _
    $region15: #{tpu_custom_call.1} parent=1 // pred_check_branch
      %34 = sbr.rel (0) target = $region17
    $region16: #{tpu_custom_call.1} parent=1 // pred_region
      %35 = dma.done [#allocation6], 64
    $region17: #{tpu_custom_call.1} parent=1 // pred_fallthru
      _
    %v36 = vld [vmem:[#allocation2] sm:$0xf]
    %v37 = vld [vmem:[#allocation5] sm:$0xf]
    %v38 = vmul.f32 %v36, %v37
    %v39 = vround.ne.pseudo %v38
    %v40 = vlaneseq
    %vm41 = vcmp.ge.s32.totalorder %v40, 0
    %vm42 = vcmp.lt.s32.totalorder %v40, 512
    %vm43 = vmand %vm41, %vm42
    %44 = vst.msk [vmem:[#allocation7] sm:$0xf] %vm43, %v39
    // Predicated region
    $region18: #{tpu_custom_call.1} parent=1 // pred_check
      _
    $region19: #{tpu_custom_call.1} parent=1 // pred_check_branch
      %46 = sbr.rel (0) target = $region21
    $region20: #{tpu_custom_call.1} parent=1 // pred_region
      %s48 = ssub.s32 64, 64
      %49 = vsyncadd [#allocation4], %s48
      %s51 = sshll.u32 [#allocation7], 4
      %s52 = int_to_ptr.vmem [resolvable:$true] %s51
      %54 = dma.vmem_to_hbm [thread:$0]  %s52, 64, %s2, [#allocation4]
    $region21: #{tpu_custom_call.1} parent=1 // pred_fallthru
      _
    // Predicated region
    $region22: #{tpu_custom_call.1} parent=1 // pred_check
      _
    $region23: #{tpu_custom_call.1} parent=1 // pred_check_branch
      %56 = sbr.rel (0) target = $region25
    $region24: #{tpu_custom_call.1} parent=1 // pred_region
      %57 = dma.done [#allocation4], 64
    $region25: #{tpu_custom_call.1} parent=1 // pred_fallthru
      _
    %58 = vsyncpa [#allocation3], 1
    %59 = vsyncpa [#allocation6], 1
    %60 = vsyncpa [#allocation4], 1

</llo_original>
